<compile_context>
chip_gen: v6e
topology: v6e:2x2x1
jax: 0.10.0
libtpu: 0.0.40
codegen_flags: <defaults>
</compile_context>

<pallas_src>
import functools

import jax
import jax.numpy as jnp
from jax import lax
from jax.experimental import pallas as pl
from jax.experimental.pallas import tpu as pltpu


_LANE = 128
_MAX_GROUPS = 256          # bounds the unrolled lane-group loop in the chunked path


def _round_up(x, m):
    return ((x + m - 1) // m) * m


def _sublane_quantum(dtype):
    # Sub-32-bit dtypes pack along sublanes: f32 -> 8, bf16 -> 16, int8/fp8 -> 32.
    return {4: 8, 2: 16, 1: 32}.get(jnp.dtype(dtype).itemsize, 8)


def _default_block_bytes():
    try:
        vmem = int(pltpu.get_tpu_info().vmem_capacity_bytes)
    except Exception:
        vmem = 0
    if vmem >= 96 * 1024 * 1024:     # v5e / v6e: 128 MiB physical VMEM
        return 16 * 1024 * 1024
    return 12 * 1024 * 1024          # v7x (64 MiB physical) or unknown backend


def _gap_rows_kernel(x_ref, o_ref, *, inv_hw):
    """Single-pass path: one (rt, HW) block per grid step (whole spatial extent)."""
    x = x_ref[...].astype(jnp.float32)            # (rt, HW)
    row_sum = jnp.sum(x, axis=-1)                 # bulk = VPU vreg adds + 1 XLU/vreg
    o_ref[...] = (row_sum * inv_hw).reshape(o_ref.shape).astype(o_ref.dtype)


def _gap_chunked_kernel(x_ref, o_ref, acc_ref, *, inv_hw, tail_valid):
    """Huge-H*W path: grid axis 1 walks 128-aligned spatial chunks of a row tile.

    acc_ref is a lane-preserving (rt, 128) f32 accumulator: chunks are folded in with
    pure VPU adds over static 128-lane slices; the single cross-lane (XLU) reduce
    happens once per row tile in the finalize step.
    """
    k = pl.program_id(1)
    n_k = pl.num_programs(1)
    rt, st = x_ref.shape
    n_groups = st // _LANE

    @pl.when(k == 0)
    def _init():
        acc_ref[...] = jnp.zeros_like(acc_ref)

    def _accumulate(masked):
        acc = acc_ref[...]
        for j in range(n_groups):                      # static, <= _MAX_GROUPS
            lo = j * _LANE
            if masked and lo >= tail_valid:
                continue                               # fully past the valid columns
            blk = x_ref[:, lo:lo + _LANE].astype(jnp.float32)
            if masked and lo + _LANE > tail_valid:     # group straddles the valid edge
                col = lo + lax.broadcasted_iota(jnp.int32, (rt, _LANE), 1)
                blk = jnp.where(col < tail_valid, blk, 0.0)
            acc = acc + blk
        acc_ref[...] = acc

    if tail_valid == st:                               # H*W is a multiple of st
        _accumulate(masked=False)
    else:
        @pl.when(k < n_k - 1)
        def _full_chunk():
            _accumulate(masked=False)

        @pl.when(k == n_k - 1)
        def _tail_chunk():
            _accumulate(masked=True)

    @pl.when(k == n_k - 1)
    def _finalize():
        row_sum = jnp.sum(acc_ref[...], axis=-1)       # (rt,) one lane reduce per vreg
        o_ref[...] = (row_sum * inv_hw).reshape(o_ref.shape).astype(o_ref.dtype)


def global_avg_pool2d(x, *, block_bytes=None):
    """x: (N, C, H, W) -> (N, C, 1, 1); matches F.avg_pool2d(x, kernel_size=x.shape[2:])."""
    N, C, H, W = x.shape
    HW = H * W
    R = N * C
    dtype = x.dtype
    itemsize = jnp.dtype(dtype).itemsize
    sub_q = _sublane_quantum(dtype)

    if block_bytes is None:
        block_bytes = _default_block_bytes()
    elems_budget = max(sub_q * _LANE, block_bytes // itemsize)

    hw_lanes = _round_up(HW, _LANE)        # VMEM lane footprint of one spatial row
    inv_hw = 1.0 / float(HW)               # divisor is always the true H*W

    if sub_q * hw_lanes <= elems_budget:
        # ---- single-pass path: whole spatial extent per block, batch the rows ----
        rt_cap = (elems_budget // hw_lanes) // sub_q * sub_q       # >= sub_q here
        n_r = pl.cdiv(R, rt_cap)
        # v7x megacore: avoid a single-step grid when the input is big enough to split.
        if n_r == 1 and R >= 2 * sub_q and R * HW * itemsize >= (1 << 20):
            n_r = 2
        rt = _round_up(pl.cdiv(R, n_r), sub_q)
        n_r = pl.cdiv(R, rt)

        grid = (n_r,)
        kernel = functools.partial(_gap_rows_kernel, inv_hw=inv_hw)
        in_specs = [pl.BlockSpec((rt, HW), lambda i: (i, 0))]
        out_specs = pl.BlockSpec((1, 1, rt), lambda i: (i, 0, 0))
        scratch_shapes = []
        dim_sem = ("parallel",)
        blk_vmem = rt * hw_lanes * itemsize
    else:
        # ---- chunked path (very large H*W): walk 128-aligned spatial chunks ----
        rt = min(_round_up(R, sub_q), 8 * sub_q)
        st_cap = (elems_budget // rt) // _LANE * _LANE
        st_cap = max(_LANE, min(st_cap, _MAX_GROUPS * _LANE))
        n_k = pl.cdiv(HW, st_cap)
        st = _round_up(pl.cdiv(HW, n_k), _LANE)       # balanced, lane-aligned chunks
        n_k = pl.cdiv(HW, st)
        n_r = pl.cdiv(R, rt)
        tail_valid = HW - (n_k - 1) * st              # static; columns valid in last chunk

        grid = (n_r, n_k)
        kernel = functools.partial(_gap_chunked_kernel, inv_hw=inv_hw,
                                   tail_valid=tail_valid)
        in_specs = [pl.BlockSpec((rt, st), lambda i, k: (i, k))]
        out_specs = pl.BlockSpec((1, 1, rt), lambda i, k: (i, 0, 0))
        scratch_shapes = [pltpu.VMEM((rt, _LANE), jnp.float32)]
        dim_sem = ("parallel", "arbitrary")
        blk_vmem = rt * st * itemsize

    # Lane-dense 2-D view: free reshape of the contiguous NCHW buffer (no transpose,
    # no padding pass).  Ragged edges are covered by the cdiv grid: over-covered rows
    # produce garbage that is sliced off below; the over-covered spatial tail is
    # masked inside the chunked kernel (single-pass blocks use the exact HW extent).
    x2 = x.reshape(R, HW)

    vmem_limit = min(100 * 1024 * 1024,
                     max(32 * 1024 * 1024, 2 * blk_vmem + 8 * 1024 * 1024))

    out = pl.pallas_call(
        kernel,
        out_shape=jax.ShapeDtypeStruct((n_r, 1, rt), dtype),
        grid_spec=pltpu.PrefetchScalarGridSpec(
            num_scalar_prefetch=0,
            grid=grid,
            in_specs=in_specs,
            out_specs=out_specs,
            scratch_shapes=scratch_shapes,
        ),
        compiler_params=pltpu.CompilerParams(
            dimension_semantics=dim_sem,
            vmem_limit_bytes=vmem_limit,
        ),
    )(x2)

    # (n_r, 1, rt) flattens row-major over the (possibly over-covered) row axis.
    return out.reshape(n_r * rt)[:R].reshape(N, C, 1, 1)


def _reference(x):
    return jnp.mean(x.astype(jnp.float32), axis=(2, 3), keepdims=True)


if __name__ == "__main__":
    key = jax.random.PRNGKey(0)

    # 1) canonical small case (single-pass path, exact tiles).
    x1 = jax.random.normal(key, (2, 4, 16, 16), dtype=jnp.float32)
    out1 = jax.block_until_ready(global_avg_pool2d(x1))
    assert out1.shape == (2, 4, 1, 1), out1.shape
    assert jnp.allclose(out1, _reference(x1), atol=1e-5, rtol=1e-5)

    # 2) ragged shapes (row overrun + non-128 spatial extent), single-pass path.
    x2 = jax.random.normal(jax.random.PRNGKey(1), (3, 5, 7, 9), dtype=jnp.float32)
    out2 = jax.block_until_ready(global_avg_pool2d(x2))
    assert out2.shape == (3, 5, 1, 1), out2.shape
    assert jnp.allclose(out2, _reference(x2), atol=1e-5, rtol=1e-5)

    # 3) many row tiles (forced tiny block budget), single-pass path.
    x3 = jax.random.normal(jax.random.PRNGKey(2), (2, 96, 10, 13), dtype=jnp.float32)
    out3 = jax.block_until_ready(global_avg_pool2d(x3, block_bytes=8 * 1024))
    assert out3.shape == (2, 96, 1, 1), out3.shape
    assert jnp.allclose(out3, _reference(x3), atol=1e-5, rtol=1e-5)

    # 4) chunked path with spatial tail masking (forced small block budget).
    x4 = jax.random.normal(jax.random.PRNGKey(3), (1, 10, 65, 70), dtype=jnp.float32)
    out4 = jax.block_until_ready(global_avg_pool2d(x4, block_bytes=64 * 1024))
    assert out4.shape == (1, 10, 1, 1), out4.shape
    assert jnp.allclose(out4, _reference(x4), atol=1e-5, rtol=1e-5)

    # 5) bf16 (16-row sublane quantum path).
    x5 = jax.random.normal(key, (2, 4, 16, 16), dtype=jnp.bfloat16)
    out5 = jax.block_until_ready(global_avg_pool2d(x5))
    assert out5.shape == (2, 4, 1, 1), out5.shape
    assert out5.dtype == jnp.bfloat16
    assert jnp.allclose(out5.astype(jnp.float32), _reference(x5), atol=1e-2, rtol=1e-2)

    print("KERNEL_OK")
</pallas_src>

<mosaic_0001>
module attributes {stable_mosaic.version = 11 : i64} {
  func.func @_gap_rows_kernel(%arg0: i32, %arg1: memref<8x256xf32, #tpu.memory_space<vmem>>, %arg2: memref<1x1x8xf32, #tpu.memory_space<vmem>>) attributes {dimension_semantics = [#tpu.dimension_semantics<parallel>], iteration_bounds = array<i64: 1>, scalar_prefetch = 0 : i64, scratch_operands = 0 : i64, tpu.core_type = #tpu.core_type<tc>, window_params = [{transform_indices = @transform_0, window_bounds = array<i64: 8, 256>}, {transform_indices = @transform_1, window_bounds = array<i64: 1, 1, 8>}]} {
    %c0 = arith.constant 0 : index
    %c0_0 = arith.constant 0 : index
    %0 = vector.load %arg1[%c0, %c0_0] : memref<8x256xf32, #tpu.memory_space<vmem>>, vector<8x256xf32>
    %cst = arith.constant dense<0.000000e+00> : vector<8xf32>
    %1 = vector.multi_reduction <add>, %0, %cst [1] : vector<8x256xf32> to vector<8xf32>
    %cst_1 = arith.constant 3.906250e-03 : f32
    %2 = vector.broadcast %cst_1 : f32 to vector<8xf32>
    %3 = arith.mulf %1, %2 : vector<8xf32>
    %4 = vector.shape_cast %3 : vector<8xf32> to vector<1x1x8xf32>
    %c0_2 = arith.constant 0 : index
    %c0_3 = arith.constant 0 : index
    %c0_4 = arith.constant 0 : index
    %5 = vector.load %arg2[%c0_2, %c0_3, %c0_4] : memref<1x1x8xf32, #tpu.memory_space<vmem>>, vector<1x1x8xf32>
    tpu.vector_store %arg2[%c0_2, %c0_3, %c0_4], %4 {strides = array<i32>} : memref<1x1x8xf32, #tpu.memory_space<vmem>>, vector<1x1x8xf32>,
    return
  }
  func.func @transform_0(%arg0: i32) -> (i32, i32) {
    %c0_i32 = arith.constant 0 : i32
    %c0_i32_0 = arith.constant 0 : i32
    return %arg0, %c0_i32 : i32, i32
  }
  func.func @transform_1(%arg0: i32) -> (i32, i32, i32) {
    %c0_i32 = arith.constant 0 : i32
    %c0_i32_0 = arith.constant 0 : i32
    %c0_i32_1 = arith.constant 0 : i32
    return %arg0, %c0_i32, %c0_i32_0 : i32, i32, i32
  }
}

</mosaic_0001>

<llo_original>
// kernel: tpu_custom_call.1
$region0: #{tpu_custom_call.1}
  #allocation0 [shape = 'u32[]', space=smem, size = 0x4, offset = 0x4, fixed_abs, tag = 'smem constant byte address 0x4 - core index']
  #allocation1 [shape = 'u32[144,128]{1,0:T(1,128)}', space=vmem, size = 0x12000, scoped, tag = 'internal scratch']
  %s0 = inlined_call_operand.hbm [shape: f32[8,256], index: 0, kind: input, shape index: {}]
  %s1 = inlined_call_operand.hbm [shape: f32[1,1,8], index: 1, kind: output, shape index: {}]
  %s2 = sld [smem:[#allocation0]]
  $region18: #{tpu_custom_call.1} parent=0
    _
  %s4 = ssub.s32 1, %s2
  %s5 = scalar_select 0, %s4, %s2
  $region1: #{tpu_custom_call.1} parent=0
    #allocation2 [shape = 'u8[8192]{0}', space=vmem, size = 0x2000, scoped, tag = 'input window, operand 0, single buffered']
    #allocation3 [shape = 's32[1]{0}', space=sflag, size = 0x4, scoped, tag = 'scoped memory for tpu_custom_call.1']
    #allocation4 [shape = 's32[1]{0}', space=sflag, size = 0x4, scoped, tag = 'scoped memory for tpu_custom_call.1']
    #allocation5 [shape = 'u8[512]{0}', space=vmem, size = 0x400, scoped, tag = 'output window, operand 0, single buffered']
    %6 = vsyncpa [#allocation3], 0
    %7 = vsyncpa [#allocation4], 0
    // Predicated region
    $region2: #{tpu_custom_call.1} parent=1 // pred_check
      _
    $region3: #{tpu_custom_call.1} parent=1 // pred_check_branch
      %9 = sbr.rel (0) target = $region5
    $region4: #{tpu_custom_call.1} parent=1 // pred_region
      %s11 = ssub.s32 256, 256
      %12 = vsyncadd [#allocation3], %s11
      %s14 = sshll.u32 [#allocation2], 4
      %s15 = int_to_ptr.vmem [resolvable:$true] %s14
      %17 = dma.hbm_to_vmem [thread:$0]  %s0, 256, %s15, [#allocation3]
    $region5: #{tpu_custom_call.1} parent=1 // pred_fallthru
      _
    // Predicated region
    $region6: #{tpu_custom_call.1} parent=1 // pred_check
      _
    $region7: #{tpu_custom_call.1} parent=1 // pred_check_branch
      %19 = sbr.rel (0) target = $region9
    $region8: #{tpu_custom_call.1} parent=1 // pred_region
      %20 = dma.done [#allocation3], 256
    $region9: #{tpu_custom_call.1} parent=1 // pred_fallthru
      _
    %v21 = vld [vmem:[#allocation2] sm:$0xff]
    %v22 = vld [vmem:[#allocation2 + $0x8] sm:$0xff]
    %v23 = vadd.f32 %v21, %v22
    %24 = vadd.xlane.f32.xlu0 %v23
    %v25 = vpop.xlane.xlu0 %24
    %v26 = vmul.f32 %v25, 0.00390625
    %v28 = vlaneseq
    %v29 = vand.u32 %v28, 127
    %v30 = vlaneseq
    %v31 = vshrl.u32 %v30, 7
    %v32 = vsub.s32 %v29, %v31
    %v33 = vrot.slane %v26, %v32
    %vm35 = vcmask 57344
    %36 = vst.msk [vmem:[#allocation5] sm:$0x1] %vm35, %v33
    // Predicated region
    $region10: #{tpu_custom_call.1} parent=1 // pred_check
      _
    $region11: #{tpu_custom_call.1} parent=1 // pred_check_branch
      %38 = sbr.rel (0) target = $region13
    $region12: #{tpu_custom_call.1} parent=1 // pred_region
      %s40 = ssub.s32 16, 16
      %41 = vsyncadd [#allocation4], %s40
      %s43 = sshll.u32 [#allocation5], 4
      %s44 = int_to_ptr.vmem [resolvable:$true] %s43
      %46 = dma.vmem_to_hbm [thread:$0]  %s44, 16, %s1, [#allocation4]
    $region13: #{tpu_custom_call.1} parent=1 // pred_fallthru
      _
    // Predicated region
    $region14: #{tpu_custom_call.1} parent=1 // pred_check
      _
    $region15: #{tpu_custom_call.1} parent=1 // pred_check_branch
      %48 = sbr.rel (0) target = $region17
    $region16: #{tpu_custom_call.1} parent=1 // pred_region
      %49 = dma.done [#allocation4], 16
    $region17: #{tpu_custom_call.1} parent=1 // pred_fallthru
      _
    %50 = vsyncpa [#allocation3], 1
    %51 = vsyncpa [#allocation4], 1

</llo_original>
